<compile_context>
chip_gen: v7x
topology: tpu7x:2x2x1
jax: 0.10.0
libtpu: 0.0.40
codegen_flags: <defaults>
</compile_context>

<pallas_src>
import functools

import jax
import jax.numpy as jnp
from jax.experimental import pallas as pl
from jax.experimental.pallas import tpu as pltpu


# ----------------------------- in-kernel helpers --------------------------- #

def _layer_norm(x, gamma, beta, eps):
    mean = jnp.mean(x, axis=-1, keepdims=True)
    var = jnp.mean(jnp.square(x - mean), axis=-1, keepdims=True)
    return (x - mean) * jax.lax.rsqrt(var + eps) * gamma + beta


def _gelu(x):
    # exact (erf) GELU, as in BERT (EUP slot overlaps MXU on v6e/v7x)
    return 0.5 * x * (1.0 + jax.lax.erf(x / jnp.sqrt(2.0).astype(x.dtype)))


def _mha_accum(q, k, v, wo, mask_add, nh):
    """Multi-head attention fused with the output projection.

    q: (S, H) f32 (already scaled via folded Q weights), k/v: (T, H) any dtype,
    wo: (H, H) bf16, mask_add: (1, T) f32.

    Per head: scores via dot_general contracting the last dims (no explicit
    k.T transpose), softmax, (p @ v_h), then accumulate through the matching
    wo row-slice — no lane-dim concat, single (S, H) f32 accumulator live.
    """
    S, H = q.shape
    dh = H // nh
    q_b = q.astype(jnp.bfloat16)
    k_b = k.astype(jnp.bfloat16)
    v_b = v.astype(jnp.bfloat16)
    acc = jnp.zeros((S, H), jnp.float32)
    for h in range(nh):
        sl = slice(h * dh, (h + 1) * dh)
        s = jax.lax.dot_general(
            q_b[:, sl], k_b[:, sl],
            dimension_numbers=(((1,), (1,)), ((), ())),
            preferred_element_type=jnp.float32)                  # (S, T)
        s = s + mask_add
        s = s - jnp.max(s, axis=-1, keepdims=True)
        p = jnp.exp(s)
        p = p * pl.reciprocal(jnp.sum(p, axis=-1, keepdims=True), approx=True)
        ctx_h = jnp.dot(p.astype(jnp.bfloat16), v_b[:, sl],
                        preferred_element_type=jnp.float32)       # (S, dh)
        acc = acc + jnp.dot(ctx_h.astype(jnp.bfloat16), wo[sl, :],
                            preferred_element_type=jnp.float32)   # (S, H)
    return acc


# ----------------------------- Pallas kernels ------------------------------ #

def _stacked_layer_kernel(*refs, is_cross, nh, eps):
    """One BERT layer per grid step; hidden carried in an f32 VMEM scratch
    across the inner (layer) grid axis, so the Pallas pipeline prefetches
    layer l+1 weights while layer l computes."""
    if is_cross:
        (x_ref, smask_ref, wqkv_ref, bqkv_ref, wo_ref, bo_ref, ln1_ref,
         wxq_ref, bxq_ref, kv_ref, vmask_ref, wxo_ref, bxo_ref, xln_ref,
         wfi_ref, bfi_ref, wfo_ref, bfo_ref, ln2_ref, o_ref, acc_ref) = refs
    else:
        (x_ref, smask_ref, wqkv_ref, bqkv_ref, wo_ref, bo_ref, ln1_ref,
         wfi_ref, bfi_ref, wfo_ref, bfo_ref, ln2_ref, o_ref, acc_ref) = refs

    l = pl.program_id(1)

    @pl.when(l == 0)
    def _():
        acc_ref[...] = x_ref[...][0].astype(jnp.float32)

    x = acc_ref[...]                                              # (S, H) f32
    smask = smask_ref[...][0]                                     # (1, S)
    H = x.shape[-1]

    # --- self-attention, fused QKV matmul (scale pre-folded into Q weights) ---
    qkv = jnp.dot(x.astype(jnp.bfloat16), wqkv_ref[...][0],
                  preferred_element_type=jnp.float32) + bqkv_ref[...][0]
    attn = _mha_accum(qkv[:, :H], qkv[:, H:2 * H], qkv[:, 2 * H:],
                      wo_ref[...][0], smask, nh) + bo_ref[...][0]
    ln1 = ln1_ref[...][0]
    h1 = _layer_norm(attn + x, ln1[0:1, :], ln1[1:2, :], eps)

    # --- cross-attention to pre-projected (shared) visual K/V ---
    if is_cross:
        vmask = vmask_ref[...][0]                                 # (1, Tv)
        kv = kv_ref[...][0, 0]                                    # (Tv, 2H) bf16
        xq = jnp.dot(h1.astype(jnp.bfloat16), wxq_ref[...][0],
                     preferred_element_type=jnp.float32) + bxq_ref[...][0]
        xattn = _mha_accum(xq, kv[:, :H], kv[:, H:],
                           wxo_ref[...][0], vmask, nh) + bxo_ref[...][0]
        xln = xln_ref[...][0]
        h1 = _layer_norm(xattn + h1, xln[0:1, :], xln[1:2, :], eps)

    # --- feed-forward (GELU intermediate cast to bf16 before 2nd matmul) ---
    inter = jnp.dot(h1.astype(jnp.bfloat16), wfi_ref[...][0],
                    preferred_element_type=jnp.float32) + bfi_ref[...][0]
    inter = _gelu(inter)
    ffn = jnp.dot(inter.astype(jnp.bfloat16), wfo_ref[...][0],
                  preferred_element_type=jnp.float32) + bfo_ref[...][0]
    ln2 = ln2_ref[...][0]
    out = _layer_norm(ffn + h1, ln2[0:1, :], ln2[1:2, :], eps)
    acc_ref[...] = out

    @pl.when(l == pl.num_programs(1) - 1)
    def _():
        o_ref[...] = out[None].astype(o_ref.dtype)


def run_layer_stack(hidden, smask_add, stk, kv_vis=None, vmask_add=None,
                    *, nh, eps=1e-12):
    """hidden: (B, S, H) f32; smask_add: (B, 1, S); stacked weights stk[...]
    have a leading layer axis L; kv_vis: (n_pairs, B, Tv, 2H) bf16 or None."""
    B, S, H = hidden.shape
    L = stk["wqkv"].shape[0]
    is_cross = kv_vis is not None

    def wspec(arr):
        n = arr.ndim
        return pl.BlockSpec((1,) + arr.shape[1:],
                            lambda b, l, _n=n: (l,) + (0,) * (_n - 1))

    in_specs = [
        pl.BlockSpec((1, S, H), lambda b, l: (b, 0, 0)),
        pl.BlockSpec((1, 1, S), lambda b, l: (b, 0, 0)),
        wspec(stk["wqkv"]), wspec(stk["bqkv"]),
        wspec(stk["wo"]), wspec(stk["bo"]), wspec(stk["ln1"]),
    ]
    args = [hidden, smask_add, stk["wqkv"], stk["bqkv"],
            stk["wo"], stk["bo"], stk["ln1"]]

    if is_cross:
        n_pairs, _, Tv, twoH = kv_vis.shape
        in_specs += [
            wspec(stk["wxq"]), wspec(stk["bxq"]),
            # consecutive cross layers share the same pre-projected K/V pair
            pl.BlockSpec((1, 1, Tv, twoH), lambda b, l: (l // 2, b, 0, 0)),
            pl.BlockSpec((1, 1, Tv), lambda b, l: (b, 0, 0)),
            wspec(stk["wxo"]), wspec(stk["bxo"]), wspec(stk["xln"]),
        ]
        args += [stk["wxq"], stk["bxq"], kv_vis, vmask_add,
                 stk["wxo"], stk["bxo"], stk["xln"]]

    in_specs += [wspec(stk["wfi"]), wspec(stk["bfi"]),
                 wspec(stk["wfo"]), wspec(stk["bfo"]), wspec(stk["ln2"])]
    args += [stk["wfi"], stk["bfi"], stk["wfo"], stk["bfo"], stk["ln2"]]

    return pl.pallas_call(
        functools.partial(_stacked_layer_kernel, is_cross=is_cross, nh=nh, eps=eps),
        out_shape=jax.ShapeDtypeStruct((B, S, H), hidden.dtype),
        grid=(B, L),
        in_specs=in_specs,
        out_specs=pl.BlockSpec((1, S, H), lambda b, l: (b, 0, 0)),
        scratch_shapes=[pltpu.VMEM((S, H), jnp.float32)],
        compiler_params=pltpu.CompilerParams(
            dimension_semantics=("parallel", "arbitrary"),
            vmem_limit_bytes=48 * 1024 * 1024),
    )(*args)


def _embed_ln_kernel(words_ref, pos_ref, type_ref, g_ref, b_ref, o_ref, *, eps):
    x = words_ref[...][0] + pos_ref[...] + type_ref[...]          # (S, H)
    y = _layer_norm(x, g_ref[...], b_ref[...], eps)
    o_ref[...] = y[None].astype(o_ref.dtype)


def embed_layernorm(words, pos, type_vec, gamma, beta, eps=1e-12):
    """Fused embedding sum + LayerNorm."""
    B, S, H = words.shape
    return pl.pallas_call(
        functools.partial(_embed_ln_kernel, eps=eps),
        out_shape=jax.ShapeDtypeStruct((B, S, H), words.dtype),
        grid=(B,),
        in_specs=[
            pl.BlockSpec((1, S, H), lambda b: (b, 0, 0)),
            pl.BlockSpec((S, H), lambda b: (0, 0)),
            pl.BlockSpec((1, H), lambda b: (0, 0)),
            pl.BlockSpec((1, H), lambda b: (0, 0)),
            pl.BlockSpec((1, H), lambda b: (0, 0)),
        ],
        out_specs=pl.BlockSpec((1, S, H), lambda b: (b, 0, 0)),
        compiler_params=pltpu.CompilerParams(dimension_semantics=("parallel",)),
    )(words, pos, type_vec, gamma.reshape(1, H), beta.reshape(1, H))


def _kv_proj_kernel(v_ref, w_ref, b_ref, o_ref):
    y = jnp.dot(v_ref[...][0].astype(jnp.bfloat16), w_ref[...][0],
                preferred_element_type=jnp.float32) + b_ref[...][0]
    o_ref[...] = y[None, None].astype(o_ref.dtype)


def project_visual_kv(visual, kv_w, kv_b):
    """visual: (B, Tv, H); kv_w: (n_pairs, H, 2H) bf16 -> (n_pairs, B, Tv, 2H) bf16.
    One projection per shared cross-attention weight pair (share_cross_attention)."""
    B, Tv, H = visual.shape
    n_pairs, _, twoH = kv_w.shape
    return pl.pallas_call(
        _kv_proj_kernel,
        out_shape=jax.ShapeDtypeStruct((n_pairs, B, Tv, twoH), jnp.bfloat16),
        grid=(B, n_pairs),
        in_specs=[
            pl.BlockSpec((1, Tv, H), lambda b, p: (b, 0, 0)),
            pl.BlockSpec((1, H, twoH), lambda b, p: (p, 0, 0)),
            pl.BlockSpec((1, 1, twoH), lambda b, p: (p, 0, 0)),
        ],
        out_specs=pl.BlockSpec((1, 1, Tv, twoH), lambda b, p: (p, b, 0, 0)),
        compiler_params=pltpu.CompilerParams(
            dimension_semantics=("parallel", "arbitrary")),
    )(visual, kv_w, kv_b)


def _cls_head_kernel(x_ref, w1_ref, b1_ref, w2_ref, b2_ref, o_ref):
    h = jnp.dot(x_ref[...].astype(jnp.bfloat16), w1_ref[...],
                preferred_element_type=jnp.float32) + b1_ref[...]
    h = jnp.maximum(h, 0.0)
    y = jnp.dot(h.astype(jnp.bfloat16), w2_ref[...],
                preferred_element_type=jnp.float32) + b2_ref[...]
    o_ref[...] = y.astype(o_ref.dtype)


def cls_head(x, w1, b1, w2, b2):
    """Fused Linear -> ReLU -> Linear. x: (B, H) -> (B, C_pad) lane-dense logits."""
    B, H = x.shape
    Cp = w2.shape[1]
    return pl.pallas_call(
        _cls_head_kernel,
        out_shape=jax.ShapeDtypeStruct((B, Cp), jnp.float32),
        grid=(1,),
        in_specs=[
            pl.BlockSpec((B, H), lambda i: (0, 0)),
            pl.BlockSpec((H, H), lambda i: (0, 0)),
            pl.BlockSpec((1, H), lambda i: (0, 0)),
            pl.BlockSpec((H, Cp), lambda i: (0, 0)),
            pl.BlockSpec((1, Cp), lambda i: (0, 0)),
        ],
        out_specs=pl.BlockSpec((B, Cp), lambda i: (0, 0)),
    )(x, w1, b1, w2, b2)


# --------------------------- model configuration --------------------------- #

CFG = dict(
    vocab=64, max_pos=16, type_vocab=2,
    hidden=32, heads=4, intermediate=128,
    layers=4, fusion_layer=2,       # layers >= fusion_layer have cross-attention
    num_classes=10,                 # stand-in for len(CATEGORY_ID_LIST)
)


def _dense(key, din, dout):
    return {"w": jax.random.normal(key, (din, dout), jnp.float32) * 0.02,
            "b": jnp.zeros((dout,), jnp.float32)}


def _ln(h):
    return {"g": jnp.ones((h,), jnp.float32), "b": jnp.zeros((h,), jnp.float32)}


def init_params(key, cfg):
    H, I = cfg["hidden"], cfg["intermediate"]
    keys = iter(jax.random.split(key, 256))
    p = {
        "word_emb": jax.random.normal(next(keys), (cfg["vocab"], H), jnp.float32) * 0.02,
        "pos_emb": jax.random.normal(next(keys), (cfg["max_pos"], H), jnp.float32) * 0.02,
        "type_emb": jax.random.normal(next(keys), (cfg["type_vocab"], H), jnp.float32) * 0.02,
        "emb_ln": _ln(H),
        "layers": [],
        "cls1": _dense(next(keys), H, H),
        "cls2": _dense(next(keys), H, cfg["num_classes"]),
    }
    shared_cross_kv = {}   # share_cross_attention(): consecutive cross layers share K/V
    for i in range(cfg["layers"]):
        layer = {
            "q": _dense(next(keys), H, H), "k": _dense(next(keys), H, H),
            "v": _dense(next(keys), H, H), "o": _dense(next(keys), H, H),
            "ln1": _ln(H),
            "ffn_i": _dense(next(keys), H, I), "ffn_o": _dense(next(keys), I, H),
            "ln2": _ln(H),
            "is_cross": i >= cfg["fusion_layer"],
        }
        if layer["is_cross"]:
            pair = (i - cfg["fusion_layer"]) // 2
            if pair not in shared_cross_kv:
                shared_cross_kv[pair] = {"k": _dense(next(keys), H, H),
                                         "v": _dense(next(keys), H, H)}
            layer["xq"] = _dense(next(keys), H, H)
            layer["xk"] = shared_cross_kv[pair]["k"]   # shared across the pair
            layer["xv"] = shared_cross_kv[pair]["v"]
            layer["xo"] = _dense(next(keys), H, H)
            layer["xln"] = _ln(H)
        p["layers"].append(layer)
    return p


def prepare_params(params, cfg):
    """One-time preprocessing: fold attention scale into Q, concat QKV / KV,
    cast matmul weights to bf16, stack per-layer weights along a layer axis,
    pad the cls head to a lane-dense (multiple of 128) output width."""
    H = cfg["hidden"]
    nh = cfg["heads"]
    scale = 1.0 / ((H // nh) ** 0.5)
    bf16 = jnp.bfloat16

    def pack_common(lp):
        wq = lp["q"]["w"] * scale                 # fold 1/sqrt(dh) into Q
        bq = lp["q"]["b"] * scale
        return dict(
            wqkv=jnp.concatenate([wq, lp["k"]["w"], lp["v"]["w"]], axis=1).astype(bf16),
            bqkv=jnp.concatenate([bq, lp["k"]["b"], lp["v"]["b"]])[None, :],
            wo=lp["o"]["w"].astype(bf16), bo=lp["o"]["b"][None, :],
            ln1=jnp.stack([lp["ln1"]["g"], lp["ln1"]["b"]]),
            wfi=lp["ffn_i"]["w"].astype(bf16), bfi=lp["ffn_i"]["b"][None, :],
            wfo=lp["ffn_o"]["w"].astype(bf16), bfo=lp["ffn_o"]["b"][None, :],
            ln2=jnp.stack([lp["ln2"]["g"], lp["ln2"]["b"]]),
        )

    def stack(dicts):
        if not dicts:
            return None
        return {k: jnp.stack([d[k] for d in dicts]) for k in dicts[0]}

    self_layers = [lp for lp in params["layers"] if not lp["is_cross"]]
    cross_layers = [lp for lp in params["layers"] if lp["is_cross"]]

    self_stack = stack([pack_common(lp) for lp in self_layers])

    cross_packed = []
    for lp in cross_layers:
        d = pack_common(lp)
        d.update(
            wxq=(lp["xq"]["w"] * scale).astype(bf16),
            bxq=(lp["xq"]["b"] * scale)[None, :],
            wxo=lp["xo"]["w"].astype(bf16), bxo=lp["xo"]["b"][None, :],
            xln=jnp.stack([lp["xln"]["g"], lp["xln"]["b"]]),
        )
        cross_packed.append(d)
    cross_stack = stack(cross_packed)

    # shared K/V projection weights, one per consecutive cross-layer pair
    kv_w, kv_b = [], []
    for i in range(0, len(cross_layers), 2):
        lp = cross_layers[i]
        kv_w.append(jnp.concatenate([lp["xk"]["w"], lp["xv"]["w"]], axis=1).astype(bf16))
        kv_b.append(jnp.concatenate([lp["xk"]["b"], lp["xv"]["b"]])[None, :])
    kv_w = jnp.stack(kv_w) if kv_w else None
    kv_b = jnp.stack(kv_b) if kv_b else None

    C = params["cls2"]["w"].shape[1]
    Cp = ((C + 127) // 128) * 128
    w2 = jnp.zeros((H, Cp), jnp.float32).at[:, :C].set(params["cls2"]["w"])
    b2 = jnp.zeros((1, Cp), jnp.float32).at[0, :C].set(params["cls2"]["b"])

    return dict(
        word_emb=params["word_emb"], pos_emb=params["pos_emb"],
        type_emb=params["type_emb"], emb_ln=params["emb_ln"],
        self_stack=self_stack, cross_stack=cross_stack,
        kv_w=kv_w, kv_b=kv_b,
        cls_w1=params["cls1"]["w"].astype(bf16),
        cls_b1=params["cls1"]["b"][None, :],
        cls_w2=w2.astype(bf16), cls_b2=b2,
        num_classes=C,
    )


# ------------------------------ forward pass ------------------------------- #

def multimodal_forward(prepared, input_ids, text_mask, visual_embed, visual_mask,
                       labels=None, train=True, cfg=CFG):
    B, S = input_ids.shape
    nh = cfg["heads"]

    # embeddings: gather (glue) in JAX, sum + LayerNorm fused in one kernel
    words = jnp.take(prepared["word_emb"], input_ids, axis=0)         # (B, S, H)
    pos = prepared["pos_emb"][:S]                                     # (S, H)
    type_vec = prepared["type_emb"][0][None, :]                       # (1, H)
    hidden = embed_layernorm(words, pos, type_vec,
                             prepared["emb_ln"]["g"], prepared["emb_ln"]["b"])

    # additive attention masks (HF-style: (1 - mask) * -10000)
    text_mask_add = ((1.0 - text_mask) * -10000.0)[:, None, :].astype(jnp.float32)
    visual_mask_add = ((1.0 - visual_mask) * -10000.0)[:, None, :].astype(jnp.float32)

    # self-attention-only layers (0 .. fusion_layer-1), one pipelined pallas_call
    if prepared["self_stack"] is not None:
        hidden = run_layer_stack(hidden, text_mask_add, prepared["self_stack"], nh=nh)

    # cross-attention layers, with shared visual K/V pre-projected per pair
    if prepared["cross_stack"] is not None:
        kv_vis = project_visual_kv(visual_embed, prepared["kv_w"], prepared["kv_b"])
        hidden = run_layer_stack(hidden, text_mask_add, prepared["cross_stack"],
                                 kv_vis=kv_vis, vmask_add=visual_mask_add, nh=nh)

    cls_tok = hidden[:, 0, :]                                         # (B, H)
    logits = cls_head(cls_tok, prepared["cls_w1"], prepared["cls_b1"],
                      prepared["cls_w2"], prepared["cls_b2"])
    logits = logits[:, :prepared["num_classes"]]                      # drop lane padding

    pred_label_id = jnp.argmax(logits, axis=1)
    if not train:
        return pred_label_id, logits

    # train, distill=False branch
    labels = labels.squeeze(axis=1)
    logz = jax.scipy.special.logsumexp(logits, axis=1, keepdims=True)
    log_probs = logits - logz
    loss = -jnp.mean(log_probs[jnp.arange(B), labels])                # F.cross_entropy
    accuracy = (labels == pred_label_id).astype(jnp.float32).sum() / labels.shape[0]
    return loss, accuracy, pred_label_id


# ---------------------------------- main ----------------------------------- #

if __name__ == "__main__":
    cfg = CFG
    B, S, Tv, H = 2, 8, 8, cfg["hidden"]

    root = jax.random.PRNGKey(0)
    kp, k1, k2, k3 = jax.random.split(root, 4)

    params = init_params(kp, cfg)
    prepared = prepare_params(params, cfg)   # one-time weight packing (not per step)

    input_ids = jax.random.randint(k1, (B, S), 0, cfg["vocab"], dtype=jnp.int32)
    text_mask = jnp.ones((B, S), jnp.float32).at[1, -2:].set(0.0)     # some padding
    visual_embed = jax.random.normal(k2, (B, Tv, H), jnp.float32)
    visual_mask = jnp.ones((B, Tv), jnp.float32)
    labels = jax.random.randint(k3, (B, 1), 0, cfg["num_classes"], dtype=jnp.int32)

    loss, accuracy, pred_label_id = multimodal_forward(
        prepared, input_ids, text_mask, visual_embed, visual_mask,
        labels=labels, train=True)
    eval_pred_id, eval_logits = multimodal_forward(
        prepared, input_ids, text_mask, visual_embed, visual_mask, train=False)

    jax.block_until_ready((loss, accuracy, pred_label_id, eval_pred_id, eval_logits))
    print("KERNEL_OK")
</pallas_src>

<mosaic_0001>
module attributes {stable_mosaic.version = 11 : i64} {
  func.func @_embed_ln_kernel(%arg0: i32, %arg1: memref<1x8x32xf32, #tpu.memory_space<vmem>>, %arg2: memref<8x32xf32, #tpu.memory_space<vmem>>, %arg3: memref<1x32xf32, #tpu.memory_space<vmem>>, %arg4: memref<1x32xf32, #tpu.memory_space<vmem>>, %arg5: memref<1x32xf32, #tpu.memory_space<vmem>>, %arg6: memref<1x8x32xf32, #tpu.memory_space<vmem>>) attributes {dimension_semantics = [#tpu.dimension_semantics<parallel>], iteration_bounds = array<i64: 2>, scalar_prefetch = 0 : i64, scratch_operands = 0 : i64, tpu.core_type = #tpu.core_type<tc>, window_params = [{transform_indices = @transform_0, window_bounds = array<i64: 1, 8, 32>}, {pipeline_mode = #tpu.pipeline_mode<synchronous>, transform_indices = @transform_1, window_bounds = array<i64: 8, 32>}, {pipeline_mode = #tpu.pipeline_mode<synchronous>, transform_indices = @transform_2, window_bounds = array<i64: 1, 32>}, {pipeline_mode = #tpu.pipeline_mode<synchronous>, transform_indices = @transform_3, window_bounds = array<i64: 1, 32>}, {pipeline_mode = #tpu.pipeline_mode<synchronous>, transform_indices = @transform_4, window_bounds = array<i64: 1, 32>}, {transform_indices = @transform_5, window_bounds = array<i64: 1, 8, 32>}]} {
    %c0 = arith.constant 0 : index
    %c0_0 = arith.constant 0 : index
    %c0_1 = arith.constant 0 : index
    %0 = vector.load %arg1[%c0, %c0_0, %c0_1] : memref<1x8x32xf32, #tpu.memory_space<vmem>>, vector<1x8x32xf32>
    %1 = vector.shape_cast %0 : vector<1x8x32xf32> to vector<8x32xf32>
    %c0_2 = arith.constant 0 : index
    %c0_3 = arith.constant 0 : index
    %2 = vector.load %arg2[%c0_2, %c0_3] : memref<8x32xf32, #tpu.memory_space<vmem>>, vector<8x32xf32>
    %3 = arith.addf %1, %2 : vector<8x32xf32>
    %c0_4 = arith.constant 0 : index
    %c0_5 = arith.constant 0 : index
    %4 = vector.load %arg3[%c0_4, %c0_5] : memref<1x32xf32, #tpu.memory_space<vmem>>, vector<1x32xf32>
    %5 = vector.broadcast %4 : vector<1x32xf32> to vector<8x32xf32>
    %6 = arith.addf %3, %5 : vector<8x32xf32>
    %c0_6 = arith.constant 0 : index
    %c0_7 = arith.constant 0 : index
    %7 = vector.load %arg4[%c0_6, %c0_7] : memref<1x32xf32, #tpu.memory_space<vmem>>, vector<1x32xf32>
    %c0_8 = arith.constant 0 : index
    %c0_9 = arith.constant 0 : index
    %8 = vector.load %arg5[%c0_8, %c0_9] : memref<1x32xf32, #tpu.memory_space<vmem>>, vector<1x32xf32>
    %cst = arith.constant dense<0.000000e+00> : vector<8xf32>
    %9 = vector.multi_reduction <add>, %6, %cst [1] : vector<8x32xf32> to vector<8xf32>
    %10 = vector.shape_cast %9 : vector<8xf32> to vector<8x1xf32>
    %cst_10 = arith.constant 3.200000e+01 : f32
    %11 = vector.broadcast %cst_10 : f32 to vector<8x1xf32>
    %12 = arith.divf %10, %11 : vector<8x1xf32>
    %13 = vector.broadcast %12 : vector<8x1xf32> to vector<8x32xf32>
    %14 = arith.subf %6, %13 : vector<8x32xf32>
    %15 = arith.mulf %14, %14 : vector<8x32xf32>
    %cst_11 = arith.constant dense<0.000000e+00> : vector<8xf32>
    %16 = vector.multi_reduction <add>, %15, %cst_11 [1] : vector<8x32xf32> to vector<8xf32>
    %17 = vector.shape_cast %16 : vector<8xf32> to vector<8x1xf32>
    %cst_12 = arith.constant 3.200000e+01 : f32
    %18 = vector.broadcast %cst_12 : f32 to vector<8x1xf32>
    %19 = arith.divf %17, %18 : vector<8x1xf32>
    %20 = vector.broadcast %12 : vector<8x1xf32> to vector<8x32xf32>
    %21 = arith.subf %6, %20 : vector<8x32xf32>
    %cst_13 = arith.constant 9.99999996E-13 : f32
    %22 = vector.broadcast %cst_13 : f32 to vector<8x1xf32>
    %23 = arith.addf %19, %22 : vector<8x1xf32>
    %24 = math.rsqrt %23 : vector<8x1xf32>
    %25 = vector.broadcast %24 : vector<8x1xf32> to vector<8x32xf32>
    %26 = arith.mulf %21, %25 : vector<8x32xf32>
    %27 = vector.broadcast %7 : vector<1x32xf32> to vector<8x32xf32>
    %28 = arith.mulf %26, %27 : vector<8x32xf32>
    %29 = vector.broadcast %8 : vector<1x32xf32> to vector<8x32xf32>
    %30 = arith.addf %28, %29 : vector<8x32xf32>
    %31 = vector.shape_cast %30 : vector<8x32xf32> to vector<1x8x32xf32>
    %c0_14 = arith.constant 0 : index
    %c0_15 = arith.constant 0 : index
    %c0_16 = arith.constant 0 : index
    %32 = vector.load %arg6[%c0_14, %c0_15, %c0_16] : memref<1x8x32xf32, #tpu.memory_space<vmem>>, vector<1x8x32xf32>
    tpu.vector_store %arg6[%c0_14, %c0_15, %c0_16], %31 {strides = array<i32>} : memref<1x8x32xf32, #tpu.memory_space<vmem>>, vector<1x8x32xf32>,
    return
  }
  func.func @transform_0(%arg0: i32) -> (i32, i32, i32) {
    %c0_i32 = arith.constant 0 : i32
    %c0_i32_0 = arith.constant 0 : i32
    %c0_i32_1 = arith.constant 0 : i32
    return %arg0, %c0_i32, %c0_i32_0 : i32, i32, i32
  }
  func.func @transform_1(%arg0: i32) -> (i32, i32) {
    %c0_i32 = arith.constant 0 : i32
    %c0_i32_0 = arith.constant 0 : i32
    %c0_i32_1 = arith.constant 0 : i32
    return %c0_i32, %c0_i32_0 : i32, i32
  }
  func.func @transform_2(%arg0: i32) -> (i32, i32) {
    %c0_i32 = arith.constant 0 : i32
    %c0_i32_0 = arith.constant 0 : i32
    %c0_i32_1 = arith.constant 0 : i32
    return %c0_i32, %c0_i32_0 : i32, i32
  }
  func.func @transform_3(%arg0: i32) -> (i32, i32) {
    %c0_i32 = arith.constant 0 : i32
    %c0_i32_0 = arith.constant 0 : i32
    %c0_i32_1 = arith.constant 0 : i32
    return %c0_i32, %c0_i32_0 : i32, i32
  }
  func.func @transform_4(%arg0: i32) -> (i32, i32) {
    %c0_i32 = arith.constant 0 : i32
    %c0_i32_0 = arith.constant 0 : i32
    %c0_i32_1 = arith.constant 0 : i32
    return %c0_i32, %c0_i32_0 : i32, i32
  }
  func.func @transform_5(%arg0: i32) -> (i32, i32, i32) {
    %c0_i32 = arith.constant 0 : i32
    %c0_i32_0 = arith.constant 0 : i32
    %c0_i32_1 = arith.constant 0 : i32
    return %arg0, %c0_i32, %c0_i32_0 : i32, i32, i32
  }
}

</mosaic_0001>

<llo_original>
// kernel: tpu_custom_call.1
$region0: #{tpu_custom_call.1}
  #allocation0 [shape = 'u32[]', space=smem, size = 0x4, offset = 0x4, fixed_abs, tag = 'smem constant byte address 0x4 - core index']
  #allocation1 [shape = 'u32[144,128]{1,0:T(1,128)}', space=vmem, size = 0x12000, scoped, tag = 'internal scratch']
  %s0 = inlined_call_operand.hbm [shape: f32[2,8,32], index: 0, kind: input, shape index: {}]
  %s1 = inlined_call_operand.hbm [shape: f32[8,32], index: 1, kind: input, shape index: {}]
  %s2 = inlined_call_operand.vmem [shape: f32[1,32], index: 2, kind: input, shape index: {}]
  %s3 = inlined_call_operand.vmem [shape: f32[1,32], index: 3, kind: input, shape index: {}]
  %s4 = inlined_call_operand.vmem [shape: f32[1,32], index: 4, kind: input, shape index: {}]
  %s5 = inlined_call_operand.hbm [shape: f32[2,8,32], index: 5, kind: output, shape index: {}]
  %s6 = sld [smem:[#allocation0]]
  $region61: #{tpu_custom_call.1} parent=0
    _
  %s8 = ssub.s32 1, %s6
  %s9 = scalar_select 0, %s8, %s6
  $region1: #{tpu_custom_call.1} parent=0
    #allocation2 [shape = 'u8[8192]{0}', space=vmem, size = 0x2000, scoped, tag = 'input window, operand 0']
    #allocation3 [shape = 's32[2]{0}', space=sflag, size = 0x8, scoped, tag = 'scoped memory for tpu_custom_call.1']
    #allocation4 [shape = 's32[2]{0}', space=sflag, size = 0x8, scoped, tag = 'scoped memory for tpu_custom_call.1']
    #allocation5 [shape = 'u8[4096]{0}', space=vmem, size = 0x1000, scoped, tag = 'input window, operand 1, single buffered']
    #allocation6 [shape = 's32[1]{0}', space=sflag, size = 0x4, scoped, tag = 'scoped memory for tpu_custom_call.1']
    #allocation7 [shape = 'u8[8192]{0}', space=vmem, size = 0x2000, scoped, tag = 'output window, operand 0']
    %10 = vsyncpa [#allocation3], 0
    %s11 = scalar_lea.sflag [#allocation3], 1
    %12 = vsyncpa %s11, 0
    %13 = vsyncpa [#allocation6], 0
    %14 = vsyncpa [#allocation4], 0
    %s15 = scalar_lea.sflag [#allocation4], 1
    %16 = vsyncpa %s15, 0
    loop: start=0, step=1, limit=4
    $region2: #{tpu_custom_call.1} parent=1 // loop_pre_header
      _
    $region3: #{tpu_custom_call.1} parent=1 // loop_header
      %s18 = sphi 0, %s22
      %p19 = scmp.ge.s32.totalorder %s18, 4
      %s28 = sphi 0, %s30
      %s31 = sphi 0, %s28
      %s32 = sphi 0, %s31
      %s48 = sphi 0, %s32
      %s52 = sphi 0, %s52
      %s54 = sphi 0, %s52
      %s55 = sphi 0, %s54
      %s69 = sphi 0, %s55
      %s73 = sphi 0, %s73
      %s75 = sphi 0, %s73
      %s76 = sphi 0, %s75
      %s90 = sphi 0, %s76
      %s94 = sphi 0, %s94
      %s96 = sphi 0, %s94
      %s97 = sphi 0, %s96
      %s111 = sphi 0, %s97
      %s115 = sphi 0, %s115
      %s117 = sphi 0, %s115
      %s118 = sphi 0, %s117
      %s132 = sphi 0, %s118
      %s138 = sphi 0, %s140
      %s141 = sphi 0, %s138
      %s142 = sphi 0, %s141
      %s158 = sphi 0, %s142
    $region4: #{tpu_custom_call.1} parent=1 // loop_header_branch
      %21 = sbr.rel (%p19) target = $region8
    $region5: #{tpu_custom_call.1} parent=1 // loop_body
      %s23 = ssub.s32 %s18, 1
      %s24 = ssub.s32 %s18, 2
      %s25 = sadd.s32 %s18, 1
      %s26 = ssub.s32 %s18, %s25
      %p27 = scmp.eq.s32.totalorder %s26, 0
      %s29 = sadd.s32 %s28, 1
      %s30 = scalar_select %p27, %s28, %s29
      %p33 = pneg %p27
      %p34 = scmp.eq.s32.totalorder %s18, 1
      %p35 = por %p33, %p34
      %p36 = scmp.ne.s32.totalorder %s28, %s31
      %p37 = scmp.eq.s32.totalorder %s18, 0
      %p38 = por %p36, %p37
      %p39 = scmp.ne.s32.totalorder %s28, %s31
      %p40 = scmp.eq.s32.totalorder %s23, 1
      %p41 = por %p39, %p40
      %p42 = scmp.ne.s32.totalorder %s31, %s32
      %p43 = scmp.eq.s32.totalorder %s23, 0
      %p44 = por %p42, %p43
      %p45 = scmp.ne.s32.totalorder %s31, %s32
      %p46 = scmp.eq.s32.totalorder %s24, 1
      %p47 = por %p45, %p46
      %p49 = scmp.ne.s32.totalorder %s32, %s48
      %p50 = scmp.eq.s32.totalorder %s24, 0
      %p51 = por %p49, %p50
      %s53 = sadd.s32 %s52, 1
      %p56 = scmp.eq.s32.totalorder %s18, 1
      %p57 = scmp.ne.s32.totalorder %s52, %s54
      %p58 = scmp.eq.s32.totalorder %s18, 0
      %p59 = por %p57, %p58
      %p60 = scmp.ne.s32.totalorder %s52, %s54
      %p61 = scmp.eq.s32.totalorder %s23, 1
      %p62 = por %p60, %p61
      %p63 = scmp.ne.s32.totalorder %s54, %s55
      %p64 = scmp.eq.s32.totalorder %s23, 0
      %p65 = por %p63, %p64
      %p66 = scmp.ne.s32.totalorder %s54, %s55
      %p67 = scmp.eq.s32.totalorder %s24, 1
      %p68 = por %p66, %p67
      %p70 = scmp.ne.s32.totalorder %s55, %s69
      %p71 = scmp.eq.s32.totalorder %s24, 0
      %p72 = por %p70, %p71
      %s74 = sadd.s32 %s73, 1
      %p77 = scmp.eq.s32.totalorder %s18, 1
      %p78 = scmp.ne.s32.totalorder %s73, %s75
      %p79 = scmp.eq.s32.totalorder %s18, 0
      %p80 = por %p78, %p79
      %p81 = scmp.ne.s32.totalorder %s73, %s75
      %p82 = scmp.eq.s32.totalorder %s23, 1
      %p83 = por %p81, %p82
      %p84 = scmp.ne.s32.totalorder %s75, %s76
      %p85 = scmp.eq.s32.totalorder %s23, 0
      %p86 = por %p84, %p85
      %p87 = scmp.ne.s32.totalorder %s75, %s76
      %p88 = scmp.eq.s32.totalorder %s24, 1
      %p89 = por %p87, %p88
      %p91 = scmp.ne.s32.totalorder %s76, %s90
      %p92 = scmp.eq.s32.totalorder %s24, 0
      %p93 = por %p91, %p92
      %s95 = sadd.s32 %s94, 1
      %p98 = scmp.eq.s32.totalorder %s18, 1
      %p99 = scmp.ne.s32.totalorder %s94, %s96
      %p100 = scmp.eq.s32.totalorder %s18, 0
      %p101 = por %p99, %p100
      %p102 = scmp.ne.s32.totalorder %s94, %s96
      %p103 = scmp.eq.s32.totalorder %s23, 1
      %p104 = por %p102, %p103
      %p105 = scmp.ne.s32.totalorder %s96, %s97
      %p106 = scmp.eq.s32.totalorder %s23, 0
      %p107 = por %p105, %p106
      %p108 = scmp.ne.s32.totalorder %s96, %s97
      %p109 = scmp.eq.s32.totalorder %s24, 1
      %p110 = por %p108, %p109
      %p112 = scmp.ne.s32.totalorder %s97, %s111
      %p113 = scmp.eq.s32.totalorder %s24, 0
      %p114 = por %p112, %p113
      %s116 = sadd.s32 %s115, 1
      %p119 = scmp.eq.s32.totalorder %s18, 1
      %p120 = scmp.ne.s32.totalorder %s115, %s117
      %p121 = scmp.eq.s32.totalorder %s18, 0
      %p122 = por %p120, %p121
      %p123 = scmp.ne.s32.totalorder %s115, %s117
      %p124 = scmp.eq.s32.totalorder %s23, 1
      %p125 = por %p123, %p124
      %p126 = scmp.ne.s32.totalorder %s117, %s118
      %p127 = scmp.eq.s32.totalorder %s23, 0
      %p128 = por %p126, %p127
      %p129 = scmp.ne.s32.totalorder %s117, %s118
      %p130 = scmp.eq.s32.totalorder %s24, 1
      %p131 = por %p129, %p130
      %p133 = scmp.ne.s32.totalorder %s118, %s132
      %p134 = scmp.eq.s32.totalorder %s24, 0
      %p135 = por %p133, %p134
      %s136 = ssub.s32 %s18, %s25
      %p137 = scmp.eq.s32.totalorder %s136, 0
      %s139 = sadd.s32 %s138, 1
      %s140 = scalar_select %p137, %s138, %s139
      %p143 = pneg %p137
      %p144 = scmp.eq.s32.totalorder %s18, 1
      %p145 = por %p143, %p144
      %p146 = scmp.ne.s32.totalorder %s138, %s141
      %p147 = scmp.eq.s32.totalorder %s18, 0
      %p148 = por %p146, %p147
      %p149 = scmp.ne.s32.totalorder %s138, %s141
      %p150 = scmp.eq.s32.totalorder %s23, 1
      %p151 = por %p149, %p150
      %p152 = scmp.ne.s32.totalorder %s141, %s142
      %p153 = scmp.eq.s32.totalorder %s23, 0
      %p154 = por %p152, %p153
      %p155 = scmp.ne.s32.totalorder %s141, %s142
      %p156 = scmp.eq.s32.totalorder %s24, 1
      %p157 = por %p155, %p156
      %p159 = scmp.ne.s32.totalorder %s142, %s158
      %p160 = scmp.eq.s32.totalorder %s24, 0
      %p161 = por %p159, %p160
      %p162 = scmp.le.s32.totalorder 1, %s18
      %p163 = scmp.lt.s32.totalorder %s18, 3
      %p164 = pnand %p162, %p163
      %p165 = pneg %p164
      // Predicated region
      $region9: #{tpu_custom_call.1} parent=5 // pred_check
        _
      $region10: #{tpu_custom_call.1} parent=5 // pred_check_branch
        %167 = sbr.rel (%p164) target = $region12
      $region11: #{tpu_custom_call.1} parent=5 // pred_region
        %s168 = ssub.s32 %s18, 1
        // Predicated region
        $region13: #{tpu_custom_call.1} parent=11 // pred_check
          %p169 = pneg %p65
        $region14: #{tpu_custom_call.1} parent=11 // pred_check_branch
          %171 = sbr.rel (%p169) target = $region16
        $region15: #{tpu_custom_call.1} parent=11 // pred_region
          %s173 = ssub.s32 128, 128
          %174 = vsyncadd [#allocation6], %s173
          %s176 = sshll.u32 [#allocation5], 4
          %s177 = int_to_ptr.vmem [resolvable:$true] %s176
          %179 = dma.hbm_to_vmem [thread:$0]  %s1, 128, %s177, [#allocation6]
        $region16: #{tpu_custom_call.1} parent=11 // pred_fallthru
          _
        // Predicated region
        $region17: #{tpu_custom_call.1} parent=11 // pred_check
          %p180 = pneg %p86
        $region18: #{tpu_custom_call.1} parent=11 // pred_check_branch
          %182 = sbr.rel (%p180) target = $region20
        $region19: #{tpu_custom_call.1} parent=11 // pred_region
          _
        $region20: #{tpu_custom_call.1} parent=11 // pred_fallthru
          _
        // Predicated region
        $region21: #{tpu_custom_call.1} parent=11 // pred_check
          %p183 = pneg %p107
        $region22: #{tpu_custom_call.1} parent=11 // pred_check_branch
          %185 = sbr.rel (%p183) target = $region24
        $region23: #{tpu_custom_call.1} parent=11 // pred_region
          _
        $region24: #{tpu_custom_call.1} parent=11 // pred_fallthru
          _
        // Predicated region
        $region25: #{tpu_custom_call.1} parent=11 // pred_check
          %p186 = pneg %p128
        $region26: #{tpu_custom_call.1} parent=11 // pred_check_branch
          %188 = sbr.rel (%p186) target = $region28
        $region27: #{tpu_custom_call.1} parent=11 // pred_region
          _
        $region28: #{tpu_custom_call.1} parent=11 // pred_fallthru
          _
      $region12: #{tpu_custom_call.1} parent=5 // pred_fallthru
        _
      %p189 = scmp.lt.s32.totalorder %s18, 2
      // Predicated region
      $region29: #{tpu_custom_call.1} parent=5 // pred_check
        %p190 = pneg %p189
      $region30: #{tpu_custom_call.1} parent=5 // pred_check_branch
        %192 = sbr.rel (%p190) target = $region32
      $region31: #{tpu_custom_call.1} parent=5 // pred_region
        // Predicated region
        $region33: #{tpu_custom_call.1} parent=31 // pred_check
          %p193 = pneg %p38
        $region34: #{tpu_custom_call.1} parent=31 // pred_check_branch
          %195 = sbr.rel (%p193) target = $region36
        $region35: #{tpu_custom_call.1} parent=31 // pred_region
          %s196 = sand.u32 %s28, 1
          %s197 = scalar_lea.sflag [#allocation3], %s196
          %s198 = sand.u32 %s28, 1
          %s199 = smul.addr %s198, 8
          %s200 = scalar_lea.vmem [#allocation2], %s199
          %s202 = ssub.s32 128, 128
          %203 = vsyncadd %s197, %s202
          %s204 = smul.addr %s18, 128
          %s205 = scalar_lea.hbm %s0, %s204
          %s207 = sshll.u32 %s200, 4
          %s208 = int_to_ptr.vmem [resolvable:$true] %s207
          %210 = dma.hbm_to_vmem [thread:$0]  %s205, 128, %s208, %s197
        $region36: #{tpu_custom_call.1} parent=31 // pred_fallthru
          _
      $region32: #{tpu_custom_call.1} parent=5 // pred_fallthru
        _
      %p211 = scmp.le.s32.totalorder 1, %s18
      %p212 = scmp.lt.s32.totalorder %s18, 3
      %p213 = pnand %p211, %p212
      %p214 = pneg %p213
      // Predicated region
      $region37: #{tpu_custom_call.1} parent=5 // pred_check
        _
      $region38: #{tpu_custom_call.1} parent=5 // pred_check_branch
        %216 = sbr.rel (%p213) target = $region40
      $region39: #{tpu_custom_call.1} parent=5 // pred_region
        %s217 = ssub.s32 %s18, 1
        %s218 = sand.u32 %s31, 1
        %s219 = scalar_lea.sflag [#allocation3], %s218
        %s220 = sand.u32 %s31, 1
        %s221 = smul.addr %s220, 8
        %s222 = scalar_lea.vmem [#allocation2], %s221
        // Predicated region
        $region41: #{tpu_custom_call.1} parent=39 // pred_check
          %p223 = pneg %p44
        $region42: #{tpu_custom_call.1} parent=39 // pred_check_branch
          %225 = sbr.rel (%p223) target = $region44
        $region43: #{tpu_custom_call.1} parent=39 // pred_region
          %226 = dma.done %s219, 128
        $region44: #{tpu_custom_call.1} parent=39 // pred_fallthru
          _
        // Predicated region
        $region45: #{tpu_custom_call.1} parent=39 // pred_check
          %p227 = pneg %p65
        $region46: #{tpu_custom_call.1} parent=39 // pred_check_branch
          %229 = sbr.rel (%p227) target = $region48
        $region47: #{tpu_custom_call.1} parent=39 // pred_region
          %230 = dma.done [#allocation6], 128
        $region48: #{tpu_custom_call.1} parent=39 // pred_fallthru
          _
        %s231 = sand.u32 %s31, 1
        %s232 = scalar_lea.sflag [#allocation3], %s231
        %s233 = sand.u32 %s31, 1
        %s234 = smul.addr %s233, 8
        %s235 = scalar_lea.vmem [#allocation2], %s234
        %p236 = pneg %p44
        %p237 = pneg %p41
        %p238 = pneg %p65
        %p239 = pneg %p62
        %p240 = pneg %p86
        %p241 = pneg %p83
        %p242 = pneg %p107
        %p243 = pneg %p104
        %p244 = pneg %p128
        %p245 = pneg %p125
        %p246 = pneg %p154
        %p247 = pneg %p151
        %s248 = sand.u32 %s141, 1
        %s249 = scalar_lea.sflag [#allocation4], %s248
        %s250 = sand.u32 %s141, 1
        %s251 = smul.addr %s250, 8
        %s252 = scalar_lea.vmem [#allocation7], %s251
        %v253 = vld [vmem:[%s222] sm:$0xff]
        %v254 = vld [vmem:[#allocation5] sm:$0xff]
        %v255 = vadd.f32 %v253, %v254
        %v256 = vld [vmem:[%s2] sm:$0x1]
        %v258 = vlaneseq
        %v259 = vshrl.u32 %v258, 7
        %v260 = vsub.s32 0, %v259
        %v261 = vrot.slane %v256, %v260
        %v263 = vadd.f32 %v255, %v261
        %v264 = vld [vmem:[%s3] sm:$0x1]
        %v265 = vld [vmem:[%s4] sm:$0x1]
        %vm266 = vcmask 261120
        %v267 = vsel %vm266, %v263, 0.0
        %268 = vadd.xlane.f32.xlu0 %v267
        %v269 = vpop.xlane.xlu0 %268
        %v270 = vrcp.pop 32.0
        %v271 = vmul.f32 %v269, %v270
        %v272 = vsub.f32 %v263, %v271
        %v273 = vmul.f32 %v272, %v272
        %v274 = vsel %vm266, %v273, 0.0
        %275 = vadd.xlane.f32.xlu0 %v274
        %v276 = vpop.xlane.xlu0 %275
        %v277 = vmul.f32 %v276, %v270
        %v278 = vadd.f32 %v277, 1e-12
        %v279 = vrsqrt.pop %v278
        %v280 = vmul.f32 %v272, %v279
        %v282 = vlaneseq
        %v283 = vshrl.u32 %v282, 7
        %v284 = vsub.s32 0, %v283
        %v285 = vrot.slane %v264, %v284
        %v287 = vmul.f32 %v280, %v285
        %v289 = vlaneseq
        %v290 = vshrl.u32 %v289, 7
        %v291 = vsub.s32 0, %v290
        %v292 = vrot.slane %v265, %v291
        %v294 = vadd.f32 %v287, %v292
        %295 = vst.msk [vmem:[%s252] sm:$0xff] %vm266, %v294
        %s296 = sand.u32 %s141, 1
        %s297 = scalar_lea.sflag [#allocation4], %s296
        %s298 = sand.u32 %s141, 1
        %s299 = smul.addr %s298, 8
        %s300 = scalar_lea.vmem [#allocation7], %s299
        // Predicated region
        $region49: #{tpu_custom_call.1} parent=39 // pred_check
          %p301 = pneg %p151
        $region50: #{tpu_custom_call.1} parent=39 // pred_check_branch
          %303 = sbr.rel (%p301) target = $region52
        $region51: #{tpu_custom_call.1} parent=39 // pred_region
          %s305 = ssub.s32 128, 128
          %306 = vsyncadd %s297, %s305
          %s307 = smul.addr %s23, 128
          %s308 = scalar_lea.hbm %s5, %s307
          %s310 = sshll.u32 %s300, 4
          %s311 = int_to_ptr.vmem [resolvable:$true] %s310
          %313 = dma.vmem_to_hbm [thread:$0]  %s311, 128, %s308, %s297
        $region52: #{tpu_custom_call.1} parent=39 // pred_fallthru
          _
      $region40: #{tpu_custom_call.1} parent=5 // pred_fallthru
        _
      %p314 = scmp.le.s32.totalorder 2, %s18
      // Predicated region
      $region53: #{tpu_custom_call.1} parent=5 // pred_check
        %p315 = pneg %p314
      $region54: #{tpu_custom_call.1} parent=5 // pred_check_branch
        %317 = sbr.rel (%p315) target = $region56
      $region55: #{tpu_custom_call.1} parent=5 // pred_region
        %s318 = ssub.s32 %s18, 2
        // Predicated region
        $region57: #{tpu_custom_call.1} parent=55 // pred_check
          %p319 = pneg %p157
        $region58: #{tpu_custom_call.1} parent=55 // pred_check_branch
          %321 = sbr.rel (%p319) target = $region60
        $region59: #{tpu_custom_call.1} parent=55 // pred_region
          %s322 = sand.u32 %s142, 1
          %s323 = scalar_lea.sflag [#allocation4], %s322
          %s324 = sand.u32 %s142, 1
          %s325 = smul.addr %s324, 8
          %s326 = scalar_lea.vmem [#allocation7], %s325
          %327 = dma.done %s323, 128
        $region60: #{tpu_custom_call.1} parent=55 // pred_fallthru
          _
      $region56: #{tpu_custom_call.1} parent=5 // pred_fallthru
        _
    $region6: #{tpu_custom_call.1} parent=1 // loop_footer
      %s22 = sadd.s32 1, %s18
    $region7: #{tpu_custom_call.1} parent=1 // loop_footer_branch
      %17 = sbr.rel target = $region3
    $region8: #{tpu_custom_call.1} parent=1 // loop_exit
      _
    %328 = vsyncpa [#allocation3], 1
    %s329 = scalar_lea.sflag [#allocation3], 1
    %330 = vsyncpa %s329, 1
    %331 = vsyncpa [#allocation6], 1
    %332 = vsyncpa [#allocation4], 1
    %s333 = scalar_lea.sflag [#allocation4], 1
    %334 = vsyncpa %s333, 1

</llo_original>
